<compile_context>
chip_gen: v5e
topology: v5e:2x2
jax: 0.10.0
libtpu: 0.0.40
codegen_flags: <defaults>
</compile_context>

<pallas_src>
import jax
import jax.numpy as jnp
from jax.experimental import pallas as pl
from jax.experimental.pallas import tpu as pltpu

LANES = 128
SUBLANES = 8


def _round_up(x, m):
    return ((x + m - 1) // m) * m


def _content_loss_kernel(x_ref, t_ref, partial_ref, acc_ref):
    s = pl.program_id(1)

    @pl.when(s == 0)
    def _():
        acc_ref[...] = jnp.zeros_like(acc_ref)

    d = x_ref[...].astype(jnp.float32) - t_ref[...].astype(jnp.float32)
    sq = d * d
    # Fold the (block_rows, 128) tile into the resident (8, 128) accumulator.
    # The reshape only regroups whole (8,128) sublane tiles, so the axis-0 sum
    # is plain vreg-wise VPU adds — no cross-lane XLU reduce in the hot loop.
    acc_ref[...] += jnp.sum(sq.reshape(-1, SUBLANES, LANES), axis=0)

    @pl.when(s == pl.num_programs(1) - 1)
    def _():
        partial_ref[...] = acc_ref[...]


def content_loss(x, target, *, block_rows=512, num_parallel=2):
    """ContentLoss.forward: returns (input unchanged, mse_loss(input, target))."""
    assert x.shape == target.shape, "input/target shape mismatch"
    total = x.size

    # Effective tiling: rows of 128 lanes, block_rows a multiple of 8, and the
    # padded row count a whole number of (num_parallel * block_rows) chunks.
    rows = pl.cdiv(total, LANES)
    br = min(block_rows, _round_up(rows, SUBLANES))
    br = _round_up(br, SUBLANES)
    padded_rows = _round_up(rows, br * num_parallel)
    steps = padded_rows // (br * num_parallel)
    padded_total = padded_rows * LANES

    xf = jnp.ravel(x)
    tf = jnp.ravel(target)
    if padded_total != total:
        pad = padded_total - total
        xf = jnp.pad(xf, (0, pad))       # zero-pad both -> diff == 0 in the tail
        tf = jnp.pad(tf, (0, pad))
    x2 = xf.reshape(padded_rows, LANES)
    t2 = tf.reshape(padded_rows, LANES)

    partials = pl.pallas_call(
        _content_loss_kernel,
        out_shape=jax.ShapeDtypeStruct((num_parallel * SUBLANES, LANES), jnp.float32),
        grid_spec=pltpu.PrefetchScalarGridSpec(
            num_scalar_prefetch=0,
            grid=(num_parallel, steps),
            in_specs=[
                pl.BlockSpec((br, LANES), lambda p, s: (p * steps + s, 0)),
                pl.BlockSpec((br, LANES), lambda p, s: (p * steps + s, 0)),
            ],
            out_specs=pl.BlockSpec((SUBLANES, LANES), lambda p, s: (p, 0)),
            scratch_shapes=[pltpu.VMEM((SUBLANES, LANES), jnp.float32)],
        ),
        compiler_params=pltpu.CompilerParams(
            dimension_semantics=("parallel", "arbitrary"),
            vmem_limit_bytes=32 * 1024 * 1024,
        ),
    )(x2, t2)

    # Single final reduce + mean scaling on a tiny (num_parallel*8, 128) array.
    loss = jnp.sum(partials) * jnp.float32(1.0 / float(total))

    # Module returns the input unchanged — no need to copy it through the kernel.
    return x, loss


if __name__ == "__main__":
    # Small NCHW shapes consistent with the module: batch=2, channels=4, 16x16.
    key = jax.random.PRNGKey(0)
    k_x, k_t = jax.random.split(key)
    x = jax.random.normal(k_x, (2, 4, 16, 16), dtype=jnp.float32)
    target = jax.random.normal(k_t, (2, 4, 16, 16), dtype=jnp.float32)

    y, loss = content_loss(x, target)
    jax.block_until_ready((y, loss))

    # Reference check against plain JAX (== F.mse_loss + pass-through).
    ref_loss = jnp.mean((x - target) ** 2)
    assert jnp.allclose(y, x), "pass-through output mismatch"
    assert jnp.allclose(loss, ref_loss, rtol=1e-6, atol=1e-6), (
        f"loss mismatch: {loss} vs {ref_loss}"
    )

    print("KERNEL_OK")
</pallas_src>

<mosaic_0001>
module attributes {stable_mosaic.version = 11 : i64} {
  func.func @_content_loss_kernel(%arg0: i32, %arg1: i32, %arg2: memref<16x128xf32, #tpu.memory_space<vmem>>, %arg3: memref<16x128xf32, #tpu.memory_space<vmem>>, %arg4: memref<8x128xf32, #tpu.memory_space<vmem>>, %arg5: memref<8x128xf32, #tpu.memory_space<vmem>>) attributes {dimension_semantics = [#tpu.dimension_semantics<parallel>, #tpu.dimension_semantics<arbitrary>], iteration_bounds = array<i64: 2, 1>, scalar_prefetch = 0 : i64, scratch_operands = 1 : i64, tpu.core_type = #tpu.core_type<tc>, window_params = [{transform_indices = @transform_0, window_bounds = array<i64: 16, 128>}, {transform_indices = @transform_1, window_bounds = array<i64: 16, 128>}, {transform_indices = @transform_2, window_bounds = array<i64: 8, 128>}]} {
    %c0_i32 = arith.constant 0 : i32
    %0 = arith.cmpi eq, %arg1, %c0_i32 : i32
    %1 = arith.extui %0 : i1 to i32
    %c0_i32_0 = arith.constant 0 : i32
    %2 = arith.cmpi ne, %1, %c0_i32_0 : i32
    scf.if %2 {
      %cst_10 = arith.constant 0.000000e+00 : f32
      %15 = vector.broadcast %cst_10 : f32 to vector<8x128xf32>
      %c0_11 = arith.constant 0 : index
      %c0_12 = arith.constant 0 : index
      %16 = vector.load %arg5[%c0_11, %c0_12] : memref<8x128xf32, #tpu.memory_space<vmem>>, vector<8x128xf32>
      tpu.vector_store %arg5[%c0_11, %c0_12], %15 {strides = array<i32>} : memref<8x128xf32, #tpu.memory_space<vmem>>, vector<8x128xf32>,
    } else {
    }
    %c0 = arith.constant 0 : index
    %c0_1 = arith.constant 0 : index
    %3 = vector.load %arg2[%c0, %c0_1] : memref<16x128xf32, #tpu.memory_space<vmem>>, vector<16x128xf32>
    %c0_2 = arith.constant 0 : index
    %c0_3 = arith.constant 0 : index
    %4 = vector.load %arg3[%c0_2, %c0_3] : memref<16x128xf32, #tpu.memory_space<vmem>>, vector<16x128xf32>
    %5 = arith.subf %3, %4 : vector<16x128xf32>
    %6 = arith.mulf %5, %5 : vector<16x128xf32>
    %c0_4 = arith.constant 0 : index
    %c0_5 = arith.constant 0 : index
    %7 = vector.load %arg5[%c0_4, %c0_5] : memref<8x128xf32, #tpu.memory_space<vmem>>, vector<8x128xf32>
    %8 = vector.shape_cast %6 : vector<16x128xf32> to vector<2x8x128xf32>
    %cst = arith.constant dense<0.000000e+00> : vector<8x128xf32>
    %9 = vector.multi_reduction <add>, %8, %cst [0] : vector<2x8x128xf32> to vector<8x128xf32>
    %10 = arith.addf %7, %9 : vector<8x128xf32>
    %c0_6 = arith.constant 0 : index
    %c0_7 = arith.constant 0 : index
    %11 = vector.load %arg5[%c0_6, %c0_7] : memref<8x128xf32, #tpu.memory_space<vmem>>, vector<8x128xf32>
    tpu.vector_store %arg5[%c0_6, %c0_7], %10 {strides = array<i32>} : memref<8x128xf32, #tpu.memory_space<vmem>>, vector<8x128xf32>,
    %c0_i32_8 = arith.constant 0 : i32
    %12 = arith.cmpi eq, %arg1, %c0_i32_8 : i32
    %13 = arith.extui %12 : i1 to i32
    %c0_i32_9 = arith.constant 0 : i32
    %14 = arith.cmpi ne, %13, %c0_i32_9 : i32
    scf.if %14 {
      %c0_10 = arith.constant 0 : index
      %c0_11 = arith.constant 0 : index
      %15 = vector.load %arg5[%c0_10, %c0_11] : memref<8x128xf32, #tpu.memory_space<vmem>>, vector<8x128xf32>
      %c0_12 = arith.constant 0 : index
      %c0_13 = arith.constant 0 : index
      %16 = vector.load %arg4[%c0_12, %c0_13] : memref<8x128xf32, #tpu.memory_space<vmem>>, vector<8x128xf32>
      tpu.vector_store %arg4[%c0_12, %c0_13], %15 {strides = array<i32>} : memref<8x128xf32, #tpu.memory_space<vmem>>, vector<8x128xf32>,
    } else {
    }
    return
  }
  func.func @transform_0(%arg0: i32, %arg1: i32) -> (i32, i32) {
    %c1_i32 = arith.constant 1 : i32
    %0 = arith.muli %arg0, %c1_i32 : i32
    %1 = arith.addi %0, %arg1 : i32
    %c0_i32 = arith.constant 0 : i32
    %c0_i32_0 = arith.constant 0 : i32
    return %1, %c0_i32 : i32, i32
  }
  func.func @transform_1(%arg0: i32, %arg1: i32) -> (i32, i32) {
    %c1_i32 = arith.constant 1 : i32
    %0 = arith.muli %arg0, %c1_i32 : i32
    %1 = arith.addi %0, %arg1 : i32
    %c0_i32 = arith.constant 0 : i32
    %c0_i32_0 = arith.constant 0 : i32
    return %1, %c0_i32 : i32, i32
  }
  func.func @transform_2(%arg0: i32, %arg1: i32) -> (i32, i32) {
    %c0_i32 = arith.constant 0 : i32
    %c0_i32_0 = arith.constant 0 : i32
    return %arg0, %c0_i32 : i32, i32
  }
}

</mosaic_0001>

<llo_original>
// kernel: tpu_custom_call.1
$region0: #{tpu_custom_call.1}
  #allocation0 [shape = 'u32[]', space=smem, size = 0x4, offset = 0x4, fixed_abs, tag = 'smem constant byte address 0x4 - core index']
  #allocation1 [shape = 'u32[72,128]{1,0:T(1,128)}', space=vmem, size = 0x9000, scoped, tag = 'internal scratch']
  #allocation2 [shape = 'f32[8,128]{1,0:T(8,128)}', space=vmem, size = 0x1000, scoped, tag = 'scratch operand']
  %s0 = inlined_call_operand.hbm [shape: f32[32,128], index: 0, kind: input, shape index: {}]
  %s1 = inlined_call_operand.hbm [shape: f32[32,128], index: 1, kind: input, shape index: {}]
  %s2 = inlined_call_operand.hbm [shape: f32[16,128], index: 2, kind: output, shape index: {}]
  %s3 = sld [smem:[#allocation0]]
  $region57: #{tpu_custom_call.1} parent=0
    _
  %s5 = ssub.s32 1, %s3
  %s6 = scalar_select 0, %s5, %s3
  $region1: #{tpu_custom_call.1} parent=0
    #allocation3 [shape = 'u8[16384]{0}', space=vmem, size = 0x4000, scoped, tag = 'input window, operand 0']
    #allocation4 [shape = 's32[2]{0}', space=sflag, size = 0x8, scoped, tag = 'scoped memory for tpu_custom_call.1']
    #allocation5 [shape = 's32[2]{0}', space=sflag, size = 0x8, scoped, tag = 'scoped memory for tpu_custom_call.1']
    #allocation6 [shape = 'u8[16384]{0}', space=vmem, size = 0x4000, scoped, tag = 'input window, operand 1']
    #allocation7 [shape = 's32[2]{0}', space=sflag, size = 0x8, scoped, tag = 'scoped memory for tpu_custom_call.1']
    #allocation8 [shape = 'u8[8192]{0}', space=vmem, size = 0x2000, scoped, tag = 'output window, operand 0']
    %7 = vsyncpa [#allocation4], 0
    %s8 = scalar_lea.sflag [#allocation4], 1
    %9 = vsyncpa %s8, 0
    %10 = vsyncpa [#allocation7], 0
    %s11 = scalar_lea.sflag [#allocation7], 1
    %12 = vsyncpa %s11, 0
    %13 = vsyncpa [#allocation5], 0
    %s14 = scalar_lea.sflag [#allocation5], 1
    %15 = vsyncpa %s14, 0
    loop: start=0, step=1, limit=4
    $region2: #{tpu_custom_call.1} parent=1 // loop_pre_header
      _
    $region3: #{tpu_custom_call.1} parent=1 // loop_header
      %s17 = sphi 0, %s21
      %p18 = scmp.ge.s32.totalorder %s17, 4
      %s24 = sphi 0, %s36
      %s25 = sphi 0, %s32
      %s26 = sphi 0, %s24
      %s27 = sphi 0, %s25
      %s28 = sphi 0, %s26
      %s29 = sphi 0, %s27
      %s41 = sphi 0, %s43
      %s44 = sphi 0, %s41
      %s45 = sphi 0, %s44
      %s61 = sphi 0, %s45
      %s69 = sphi 0, %s71
      %s72 = sphi 0, %s69
      %s73 = sphi 0, %s72
      %s89 = sphi 0, %s73
      %s95 = sphi 0, %s97
      %s98 = sphi 0, %s95
      %s99 = sphi 0, %s98
      %s115 = sphi 0, %s99
    $region4: #{tpu_custom_call.1} parent=1 // loop_header_branch
      %20 = sbr.rel (%p18) target = $region8
    $region5: #{tpu_custom_call.1} parent=1 // loop_body
      %s22 = ssub.s32 %s17, 1
      %s23 = ssub.s32 %s17, 2
      %s30 = sadd.s32 1, %s25
      %p31 = scmp.ge.s32.totalorder %s30, 1
      %s32 = scalar_select %p31, 0, %s30
      %s33 = sadd.s32 1, %s24
      %s34 = scalar_select %p31, %s33, %s24
      %p35 = scmp.ge.s32.totalorder %s34, 2
      %s36 = scalar_select %p35, 0, %s34
      %s37 = sadd.s32 %s24, %s25
      %s38 = sadd.s32 %s36, %s32
      %s39 = ssub.s32 %s37, %s38
      %p40 = scmp.eq.s32.totalorder %s39, 0
      %s42 = sadd.s32 %s41, 1
      %s43 = scalar_select %p40, %s41, %s42
      %p46 = pneg %p40
      %p47 = scmp.eq.s32.totalorder %s17, 1
      %p48 = por %p46, %p47
      %p49 = scmp.ne.s32.totalorder %s41, %s44
      %p50 = scmp.eq.s32.totalorder %s17, 0
      %p51 = por %p49, %p50
      %p52 = scmp.ne.s32.totalorder %s41, %s44
      %p53 = scmp.eq.s32.totalorder %s22, 1
      %p54 = por %p52, %p53
      %p55 = scmp.ne.s32.totalorder %s44, %s45
      %p56 = scmp.eq.s32.totalorder %s22, 0
      %p57 = por %p55, %p56
      %p58 = scmp.ne.s32.totalorder %s44, %s45
      %p59 = scmp.eq.s32.totalorder %s23, 1
      %p60 = por %p58, %p59
      %p62 = scmp.ne.s32.totalorder %s45, %s61
      %p63 = scmp.eq.s32.totalorder %s23, 0
      %p64 = por %p62, %p63
      %s65 = sadd.s32 %s24, %s25
      %s66 = sadd.s32 %s36, %s32
      %s67 = ssub.s32 %s65, %s66
      %p68 = scmp.eq.s32.totalorder %s67, 0
      %s70 = sadd.s32 %s69, 1
      %s71 = scalar_select %p68, %s69, %s70
      %p74 = pneg %p68
      %p75 = scmp.eq.s32.totalorder %s17, 1
      %p76 = por %p74, %p75
      %p77 = scmp.ne.s32.totalorder %s69, %s72
      %p78 = scmp.eq.s32.totalorder %s17, 0
      %p79 = por %p77, %p78
      %p80 = scmp.ne.s32.totalorder %s69, %s72
      %p81 = scmp.eq.s32.totalorder %s22, 1
      %p82 = por %p80, %p81
      %p83 = scmp.ne.s32.totalorder %s72, %s73
      %p84 = scmp.eq.s32.totalorder %s22, 0
      %p85 = por %p83, %p84
      %p86 = scmp.ne.s32.totalorder %s72, %s73
      %p87 = scmp.eq.s32.totalorder %s23, 1
      %p88 = por %p86, %p87
      %p90 = scmp.ne.s32.totalorder %s73, %s89
      %p91 = scmp.eq.s32.totalorder %s23, 0
      %p92 = por %p90, %p91
      %s93 = ssub.s32 %s24, %s36
      %p94 = scmp.eq.s32.totalorder %s93, 0
      %s96 = sadd.s32 %s95, 1
      %s97 = scalar_select %p94, %s95, %s96
      %p100 = pneg %p94
      %p101 = scmp.eq.s32.totalorder %s17, 1
      %p102 = por %p100, %p101
      %p103 = scmp.ne.s32.totalorder %s95, %s98
      %p104 = scmp.eq.s32.totalorder %s17, 0
      %p105 = por %p103, %p104
      %p106 = scmp.ne.s32.totalorder %s95, %s98
      %p107 = scmp.eq.s32.totalorder %s22, 1
      %p108 = por %p106, %p107
      %p109 = scmp.ne.s32.totalorder %s98, %s99
      %p110 = scmp.eq.s32.totalorder %s22, 0
      %p111 = por %p109, %p110
      %p112 = scmp.ne.s32.totalorder %s98, %s99
      %p113 = scmp.eq.s32.totalorder %s23, 1
      %p114 = por %p112, %p113
      %p116 = scmp.ne.s32.totalorder %s99, %s115
      %p117 = scmp.eq.s32.totalorder %s23, 0
      %p118 = por %p116, %p117
      %p119 = scmp.le.s32.totalorder 1, %s17
      %p120 = scmp.lt.s32.totalorder %s17, 3
      %p121 = pnand %p119, %p120
      %p122 = pneg %p121
      // Predicated region
      $region9: #{tpu_custom_call.1} parent=5 // pred_check
        _
      $region10: #{tpu_custom_call.1} parent=5 // pred_check_branch
        %124 = sbr.rel (%p121) target = $region12
      $region11: #{tpu_custom_call.1} parent=5 // pred_region
        %s125 = ssub.s32 %s17, 1
      $region12: #{tpu_custom_call.1} parent=5 // pred_fallthru
        _
      %p126 = scmp.lt.s32.totalorder %s17, 2
      // Predicated region
      $region13: #{tpu_custom_call.1} parent=5 // pred_check
        %p127 = pneg %p126
      $region14: #{tpu_custom_call.1} parent=5 // pred_check_branch
        %129 = sbr.rel (%p127) target = $region16
      $region15: #{tpu_custom_call.1} parent=5 // pred_region
        // Predicated region
        $region17: #{tpu_custom_call.1} parent=15 // pred_check
          %p130 = pneg %p51
        $region18: #{tpu_custom_call.1} parent=15 // pred_check_branch
          %132 = sbr.rel (%p130) target = $region20
        $region19: #{tpu_custom_call.1} parent=15 // pred_region
          %s133 = sand.u32 %s41, 1
          %s134 = scalar_lea.sflag [#allocation4], %s133
          %s135 = sand.u32 %s41, 1
          %s136 = smul.addr %s135, 16
          %s137 = scalar_lea.vmem [#allocation3], %s136
          %s138 = sadd.s32 %s24, %s25
          %s139 = smul.u32 2, %s138
          %141 = vsyncadd %s134, 0
          %s142 = smul.addr %s139, 8
          %s143 = scalar_lea.hbm %s0, %s142
          %s144 = sshll.u32 %s143, 4
          %s145 = int_to_ptr.hbm [resolvable:$true] %s144
          %s146 = sshll.u32 %s137, 4
          %s147 = int_to_ptr.vmem [resolvable:$true] %s146
          %152 = dma.hbm_to_vmem [thread:$0]  %s145, 256, %s147, %s134, 128, 128, 8
        $region20: #{tpu_custom_call.1} parent=15 // pred_fallthru
          _
        // Predicated region
        $region21: #{tpu_custom_call.1} parent=15 // pred_check
          %p153 = pneg %p79
        $region22: #{tpu_custom_call.1} parent=15 // pred_check_branch
          %155 = sbr.rel (%p153) target = $region24
        $region23: #{tpu_custom_call.1} parent=15 // pred_region
          %s156 = sand.u32 %s69, 1
          %s157 = scalar_lea.sflag [#allocation7], %s156
          %s158 = sand.u32 %s69, 1
          %s159 = smul.addr %s158, 16
          %s160 = scalar_lea.vmem [#allocation6], %s159
          %s161 = sadd.s32 %s24, %s25
          %s162 = smul.u32 2, %s161
          %164 = vsyncadd %s157, 0
          %s165 = smul.addr %s162, 8
          %s166 = scalar_lea.hbm %s1, %s165
          %s167 = sshll.u32 %s166, 4
          %s168 = int_to_ptr.hbm [resolvable:$true] %s167
          %s169 = sshll.u32 %s160, 4
          %s170 = int_to_ptr.vmem [resolvable:$true] %s169
          %175 = dma.hbm_to_vmem [thread:$0]  %s168, 256, %s170, %s157, 128, 128, 8
        $region24: #{tpu_custom_call.1} parent=15 // pred_fallthru
          _
      $region16: #{tpu_custom_call.1} parent=5 // pred_fallthru
        _
      %p176 = scmp.le.s32.totalorder 1, %s17
      %p177 = scmp.lt.s32.totalorder %s17, 3
      %p178 = pnand %p176, %p177
      %p179 = pneg %p178
      // Predicated region
      $region25: #{tpu_custom_call.1} parent=5 // pred_check
        _
      $region26: #{tpu_custom_call.1} parent=5 // pred_check_branch
        %181 = sbr.rel (%p178) target = $region28
      $region27: #{tpu_custom_call.1} parent=5 // pred_region
        %s182 = ssub.s32 %s17, 1
        %s183 = sand.u32 %s44, 1
        %s184 = scalar_lea.sflag [#allocation4], %s183
        %s185 = sand.u32 %s44, 1
        %s186 = smul.addr %s185, 16
        %s187 = scalar_lea.vmem [#allocation3], %s186
        // Predicated region
        $region29: #{tpu_custom_call.1} parent=27 // pred_check
          %p188 = pneg %p57
        $region30: #{tpu_custom_call.1} parent=27 // pred_check_branch
          %190 = sbr.rel (%p188) target = $region32
        $region31: #{tpu_custom_call.1} parent=27 // pred_region
          %192 = dma.done %s184, 256
        $region32: #{tpu_custom_call.1} parent=27 // pred_fallthru
          _
        %s193 = sand.u32 %s72, 1
        %s194 = scalar_lea.sflag [#allocation7], %s193
        %s195 = sand.u32 %s72, 1
        %s196 = smul.addr %s195, 16
        %s197 = scalar_lea.vmem [#allocation6], %s196
        // Predicated region
        $region33: #{tpu_custom_call.1} parent=27 // pred_check
          %p198 = pneg %p85
        $region34: #{tpu_custom_call.1} parent=27 // pred_check_branch
          %200 = sbr.rel (%p198) target = $region36
        $region35: #{tpu_custom_call.1} parent=27 // pred_region
          %202 = dma.done %s194, 256
        $region36: #{tpu_custom_call.1} parent=27 // pred_fallthru
          _
        %s203 = sand.u32 %s44, 1
        %s204 = scalar_lea.sflag [#allocation4], %s203
        %s205 = sand.u32 %s44, 1
        %s206 = smul.addr %s205, 16
        %s207 = scalar_lea.vmem [#allocation3], %s206
        %p208 = pneg %p57
        %p209 = pneg %p54
        %s210 = sand.u32 %s72, 1
        %s211 = scalar_lea.sflag [#allocation7], %s210
        %s212 = sand.u32 %s72, 1
        %s213 = smul.addr %s212, 16
        %s214 = scalar_lea.vmem [#allocation6], %s213
        %p215 = pneg %p85
        %p216 = pneg %p82
        %p217 = pneg %p111
        %p218 = pneg %p108
        %s219 = sand.u32 %s98, 1
        %s220 = scalar_lea.sflag [#allocation5], %s219
        %s221 = sand.u32 %s98, 1
        %s222 = smul.addr %s221, 8
        %s223 = scalar_lea.vmem [#allocation8], %s222
        %s224 = sadd.s32 %s26, %s27
        %s225 = smul.u32 2, %s224
        %s226 = sadd.s32 %s26, %s27
        %s227 = smul.u32 2, %s226
        %p228 = scmp.eq.s32.totalorder %s27, 0
        // Predicated region
        $region37: #{tpu_custom_call.1} parent=27 // pred_check
          %p229 = pneg %p228
        $region38: #{tpu_custom_call.1} parent=27 // pred_check_branch
          %231 = sbr.rel (%p229) target = $region40
        $region39: #{tpu_custom_call.1} parent=27 // pred_region
          %232 = vst [vmem:[#allocation2] sm:$0xff] 0.0
        $region40: #{tpu_custom_call.1} parent=27 // pred_fallthru
          _
        %v233 = vld [vmem:[%s187] sm:$0xff]
        %v234 = vld [vmem:[%s187 + $0x8] sm:$0xff]
        %v235 = vld [vmem:[%s197] sm:$0xff]
        %v236 = vld [vmem:[%s197 + $0x8] sm:$0xff]
        %v237 = vsub.f32 %v233, %v235
        %v238 = vsub.f32 %v234, %v236
        %v239 = vmul.f32 %v237, %v237
        %v240 = vmul.f32 %v238, %v238
        %v241 = vld [vmem:[#allocation2] sm:$0xff]
        %v242 = vadd.f32 %v239, %v240
        %v243 = vadd.f32 %v241, %v242
        %244 = vst [vmem:[#allocation2] sm:$0xff] %v243
        // Predicated region
        $region41: #{tpu_custom_call.1} parent=27 // pred_check
          %p245 = pneg %p228
        $region42: #{tpu_custom_call.1} parent=27 // pred_check_branch
          %247 = sbr.rel (%p245) target = $region44
        $region43: #{tpu_custom_call.1} parent=27 // pred_region
          %v248 = vld [vmem:[#allocation2] sm:$0xff]
          %249 = vst [vmem:[%s223] sm:$0xff] %v248
        $region44: #{tpu_custom_call.1} parent=27 // pred_fallthru
          _
        %s250 = sand.u32 %s98, 1
        %s251 = scalar_lea.sflag [#allocation5], %s250
        %s252 = sand.u32 %s98, 1
        %s253 = smul.addr %s252, 8
        %s254 = scalar_lea.vmem [#allocation8], %s253
        // Predicated region
        $region45: #{tpu_custom_call.1} parent=27 // pred_check
          %p255 = pneg %p108
        $region46: #{tpu_custom_call.1} parent=27 // pred_check_branch
          %257 = sbr.rel (%p255) target = $region48
        $region47: #{tpu_custom_call.1} parent=27 // pred_region
          %259 = vsyncadd %s251, 0
          %s260 = smul.addr %s26, 8
          %s261 = scalar_lea.hbm %s2, %s260
          %s263 = sshll.u32 %s254, 4
          %s264 = int_to_ptr.vmem [resolvable:$true] %s263
          %s265 = sshll.u32 %s261, 4
          %s266 = int_to_ptr.hbm [resolvable:$true] %s265
          %268 = dma.vmem_to_hbm [thread:$0]  %s264, 128, %s266, %s251
        $region48: #{tpu_custom_call.1} parent=27 // pred_fallthru
          _
      $region28: #{tpu_custom_call.1} parent=5 // pred_fallthru
        _
      %p269 = scmp.le.s32.totalorder 2, %s17
      // Predicated region
      $region49: #{tpu_custom_call.1} parent=5 // pred_check
        %p270 = pneg %p269
      $region50: #{tpu_custom_call.1} parent=5 // pred_check_branch
        %272 = sbr.rel (%p270) target = $region52
      $region51: #{tpu_custom_call.1} parent=5 // pred_region
        %s273 = ssub.s32 %s17, 2
        // Predicated region
        $region53: #{tpu_custom_call.1} parent=51 // pred_check
          %p274 = pneg %p114
        $region54: #{tpu_custom_call.1} parent=51 // pred_check_branch
          %276 = sbr.rel (%p274) target = $region56
        $region55: #{tpu_custom_call.1} parent=51 // pred_region
          %s277 = sand.u32 %s99, 1
          %s278 = scalar_lea.sflag [#allocation5], %s277
          %s279 = sand.u32 %s99, 1
          %s280 = smul.addr %s279, 8
          %s281 = scalar_lea.vmem [#allocation8], %s280
          %283 = dma.done %s278, 128
        $region56: #{tpu_custom_call.1} parent=51 // pred_fallthru
          _
      $region52: #{tpu_custom_call.1} parent=5 // pred_fallthru
        _
    $region6: #{tpu_custom_call.1} parent=1 // loop_footer
      %s21 = sadd.s32 1, %s17
    $region7: #{tpu_custom_call.1} parent=1 // loop_footer_branch
      %16 = sbr.rel target = $region3
    $region8: #{tpu_custom_call.1} parent=1 // loop_exit
      _
    %284 = vsyncpa [#allocation4], 1
    %s285 = scalar_lea.sflag [#allocation4], 1
    %286 = vsyncpa %s285, 1
    %287 = vsyncpa [#allocation7], 1
    %s288 = scalar_lea.sflag [#allocation7], 1
    %289 = vsyncpa %s288, 1
    %290 = vsyncpa [#allocation5], 1
    %s291 = scalar_lea.sflag [#allocation5], 1
    %292 = vsyncpa %s291, 1

</llo_original>
